<compile_context>
chip_gen: v7x
topology: tpu7x:2x2x1
jax: 0.10.0
libtpu: 0.0.40
codegen_flags: <defaults>
</compile_context>

<pallas_src>
import jax
import jax.numpy as jnp
from jax.experimental import pallas as pl
from jax.experimental.pallas import tpu as pltpu

LANES = 128
MAX_TILE_ROWS = 2048  # (2048, 128) f32 tile = 1 MiB per input per buffer


def _bce_kernel(p_ref, t_ref, out_ref):
    j = pl.program_id(1)  # inner ("arbitrary") reduction axis

    @pl.when(j == 0)
    def _():
        out_ref[...] = jnp.zeros_like(out_ref)

    p = p_ref[...].astype(jnp.float32)
    t = t_ref[...].astype(jnp.float32)

    # PyTorch nn.BCELoss clamps the log terms at -100 to avoid -inf/NaN.
    log_p = jnp.maximum(jnp.log(p), -100.0)
    log_1mp = jnp.maximum(jnp.log(1.0 - p), -100.0)
    term = -(t * log_p + (1.0 - t) * log_1mp)  # (tile_rows, 128) f32

    # Row-axis (sublane) reduction only; 128 lane accumulators live in row 0
    # of the resident output block. Cross-lane reduce happens in the wrapper.
    out_ref[0:1, :] = out_ref[0:1, :] + jnp.sum(term, axis=0, keepdims=True)


def bce_loss(predictions, targets):
    assert predictions.shape == targets.shape
    n = predictions.size
    assert n > 0, "BCELoss on empty input"

    # Stream the caller's dtype (bf16 callers move half the HBM bytes).
    p_flat = predictions.reshape(-1)
    t_flat = targets.reshape(-1)

    rows_needed = -(-n // LANES)
    tile_rows = min(MAX_TILE_ROWS, ((rows_needed + 7) // 8) * 8)
    tiles = -(-rows_needed // tile_rows)

    # Leading "parallel" axis: 2-way split of the row-tiles (2x on dual-TC
    # chips such as v7x; just two serial chunks on single-TC chips).
    n_split = 2 if tiles >= 2 else 1
    tiles_per_split = -(-tiles // n_split)
    rows = n_split * tiles_per_split * tile_rows
    pad = rows * LANES - n

    # Pad with p = t = 1: the BCE term is exactly 0, so no mask is needed.
    if pad:
        p_flat = jnp.pad(p_flat, (0, pad), constant_values=1)
        t_flat = jnp.pad(t_flat, (0, pad), constant_values=1)

    p2 = p_flat.reshape(rows, LANES)
    t2 = t_flat.reshape(rows, LANES)

    in_spec = pl.BlockSpec((tile_rows, LANES),
                           lambda s, j: (s * tiles_per_split + j, 0))

    partials = pl.pallas_call(
        _bce_kernel,
        out_shape=jax.ShapeDtypeStruct((n_split * 8, LANES), jnp.float32),
        grid_spec=pltpu.PrefetchScalarGridSpec(
            num_scalar_prefetch=0,
            grid=(n_split, tiles_per_split),
            in_specs=[in_spec, in_spec],
            out_specs=pl.BlockSpec((8, LANES), lambda s, j: (s, 0)),
        ),
        compiler_params=pltpu.CompilerParams(
            dimension_semantics=("parallel", "arbitrary"),
            # 2 inputs x 2 buffers x 1 MiB tile ~= 4 MiB needed; 32 MiB fits
            # every generation (v5e/v6e scoped defaults, v7x 64 MiB physical).
            vmem_limit_bytes=32 * 1024 * 1024,
        ),
    )(p2, t2)

    # Rows 1..7 of each output block are zero; full sum == sum of lane partials.
    # Mean reduction: divide by N in the wrapper (no size baked into the kernel).
    return jnp.sum(partials) / n


if __name__ == "__main__":
    key = jax.random.PRNGKey(0)

    def reference(p, t):
        log_p = jnp.maximum(jnp.log(p), -100.0)
        log_1mp = jnp.maximum(jnp.log(1.0 - p), -100.0)
        return jnp.mean(-(t * log_p + (1.0 - t) * log_1mp))

    shapes = [
        (2, 4, 16, 16),   # primary NCHW case, tile-aligned
        (3, 5, 17, 13),   # ragged size: exercises the p = t = 1 padding path
        (8, 16, 64, 64),  # multi-tile: exercises the 2-way core-split path
    ]
    for idx, shape in enumerate(shapes):
        k1, k2 = jax.random.split(jax.random.fold_in(key, idx))
        predictions = jax.nn.sigmoid(jax.random.normal(k1, shape, jnp.float32))
        targets = jax.random.uniform(k2, shape, jnp.float32)

        loss = bce_loss(predictions, targets)
        jax.block_until_ready(loss)

        ref = reference(predictions, targets)
        assert jnp.allclose(loss, ref, rtol=5e-5, atol=1e-6), (shape, loss, ref)

    print("KERNEL_OK")
</pallas_src>

<mosaic_0001>
module attributes {stable_mosaic.version = 11 : i64} {
  func.func @_bce_kernel(%arg0: i32, %arg1: i32, %arg2: memref<16x128xf32, #tpu.memory_space<vmem>>, %arg3: memref<16x128xf32, #tpu.memory_space<vmem>>, %arg4: memref<8x128xf32, #tpu.memory_space<vmem>>) attributes {dimension_semantics = [#tpu.dimension_semantics<parallel>, #tpu.dimension_semantics<arbitrary>], iteration_bounds = array<i64: 1, 1>, scalar_prefetch = 0 : i64, scratch_operands = 0 : i64, tpu.core_type = #tpu.core_type<tc>, window_params = [{transform_indices = @transform_0, window_bounds = array<i64: 16, 128>}, {transform_indices = @transform_1, window_bounds = array<i64: 16, 128>}, {transform_indices = @transform_2, window_bounds = array<i64: 8, 128>}]} {
    %c0_i32 = arith.constant 0 : i32
    %0 = arith.cmpi eq, %arg1, %c0_i32 : i32
    %1 = arith.extui %0 : i1 to i32
    %c0_i32_0 = arith.constant 0 : i32
    %2 = arith.cmpi ne, %1, %c0_i32_0 : i32
    scf.if %2 {
      %cst_13 = arith.constant 0.000000e+00 : f32
      %25 = vector.broadcast %cst_13 : f32 to vector<8x128xf32>
      %c0_14 = arith.constant 0 : index
      %c0_15 = arith.constant 0 : index
      %26 = vector.load %arg4[%c0_14, %c0_15] : memref<8x128xf32, #tpu.memory_space<vmem>>, vector<8x128xf32>
      tpu.vector_store %arg4[%c0_14, %c0_15], %25 {strides = array<i32>} : memref<8x128xf32, #tpu.memory_space<vmem>>, vector<8x128xf32>,
    } else {
    }
    %c0 = arith.constant 0 : index
    %c0_1 = arith.constant 0 : index
    %3 = vector.load %arg2[%c0, %c0_1] : memref<16x128xf32, #tpu.memory_space<vmem>>, vector<16x128xf32>
    %c0_2 = arith.constant 0 : index
    %c0_3 = arith.constant 0 : index
    %4 = vector.load %arg3[%c0_2, %c0_3] : memref<16x128xf32, #tpu.memory_space<vmem>>, vector<16x128xf32>
    %5 = math.log %3 : vector<16x128xf32>
    %cst = arith.constant -1.000000e+02 : f32
    %6 = vector.broadcast %cst : f32 to vector<16x128xf32>
    %7 = arith.maximumf %5, %6 : vector<16x128xf32>
    %cst_4 = arith.constant 1.000000e+00 : f32
    %8 = vector.broadcast %cst_4 : f32 to vector<16x128xf32>
    %9 = arith.subf %8, %3 : vector<16x128xf32>
    %10 = math.log %9 : vector<16x128xf32>
    %cst_5 = arith.constant -1.000000e+02 : f32
    %11 = vector.broadcast %cst_5 : f32 to vector<16x128xf32>
    %12 = arith.maximumf %10, %11 : vector<16x128xf32>
    %13 = arith.mulf %4, %7 : vector<16x128xf32>
    %cst_6 = arith.constant 1.000000e+00 : f32
    %14 = vector.broadcast %cst_6 : f32 to vector<16x128xf32>
    %15 = arith.subf %14, %4 : vector<16x128xf32>
    %16 = arith.mulf %15, %12 : vector<16x128xf32>
    %17 = arith.addf %13, %16 : vector<16x128xf32>
    %cst_7 = arith.constant 0.000000e+00 : f32
    %18 = vector.broadcast %cst_7 : f32 to vector<16x128xf32>
    %19 = arith.subf %18, %17 : vector<16x128xf32>
    %c0_8 = arith.constant 0 : index
    %c0_9 = arith.constant 0 : index
    %20 = vector.load %arg4[%c0_8, %c0_9] : memref<8x128xf32, #tpu.memory_space<vmem>>, vector<1x128xf32>
    %cst_10 = arith.constant dense<0.000000e+00> : vector<128xf32>
    %21 = vector.multi_reduction <add>, %19, %cst_10 [0] : vector<16x128xf32> to vector<128xf32>
    %22 = vector.shape_cast %21 : vector<128xf32> to vector<1x128xf32>
    %23 = arith.addf %20, %22 : vector<1x128xf32>
    %c0_11 = arith.constant 0 : index
    %c0_12 = arith.constant 0 : index
    %24 = vector.load %arg4[%c0_11, %c0_12] : memref<8x128xf32, #tpu.memory_space<vmem>>, vector<1x128xf32>
    tpu.vector_store %arg4[%c0_11, %c0_12], %23 {strides = array<i32>} : memref<8x128xf32, #tpu.memory_space<vmem>>, vector<1x128xf32>,
    return
  }
  func.func @transform_0(%arg0: i32, %arg1: i32) -> (i32, i32) {
    %c1_i32 = arith.constant 1 : i32
    %0 = arith.muli %arg0, %c1_i32 : i32
    %1 = arith.addi %0, %arg1 : i32
    %c0_i32 = arith.constant 0 : i32
    %c0_i32_0 = arith.constant 0 : i32
    return %1, %c0_i32 : i32, i32
  }
  func.func @transform_1(%arg0: i32, %arg1: i32) -> (i32, i32) {
    %c1_i32 = arith.constant 1 : i32
    %0 = arith.muli %arg0, %c1_i32 : i32
    %1 = arith.addi %0, %arg1 : i32
    %c0_i32 = arith.constant 0 : i32
    %c0_i32_0 = arith.constant 0 : i32
    return %1, %c0_i32 : i32, i32
  }
  func.func @transform_2(%arg0: i32, %arg1: i32) -> (i32, i32) {
    %c0_i32 = arith.constant 0 : i32
    %c0_i32_0 = arith.constant 0 : i32
    return %arg0, %c0_i32 : i32, i32
  }
}

</mosaic_0001>

<llo_original>
// kernel: tpu_custom_call.1
$region0: #{tpu_custom_call.1}
  #allocation0 [shape = 'u32[]', space=smem, size = 0x4, offset = 0x4, fixed_abs, tag = 'smem constant byte address 0x4 - core index']
  #allocation1 [shape = 'u32[144,128]{1,0:T(1,128)}', space=vmem, size = 0x12000, scoped, tag = 'internal scratch']
  %s0 = inlined_call_operand.hbm [shape: f32[16,128], index: 0, kind: input, shape index: {}]
  %s1 = inlined_call_operand.hbm [shape: f32[16,128], index: 1, kind: input, shape index: {}]
  %s2 = inlined_call_operand.hbm [shape: f32[8,128], index: 2, kind: output, shape index: {}]
  %s3 = sld [smem:[#allocation0]]
  $region30: #{tpu_custom_call.1} parent=0
    _
  %s5 = ssub.s32 1, %s3
  %s6 = scalar_select 0, %s5, %s3
  $region1: #{tpu_custom_call.1} parent=0
    #allocation2 [shape = 'u8[8192]{0}', space=vmem, size = 0x2000, scoped, tag = 'input window, operand 0, single buffered']
    #allocation3 [shape = 's32[1]{0}', space=sflag, size = 0x4, scoped, tag = 'scoped memory for tpu_custom_call.1']
    #allocation4 [shape = 's32[1]{0}', space=sflag, size = 0x4, scoped, tag = 'scoped memory for tpu_custom_call.1']
    #allocation5 [shape = 'u8[8192]{0}', space=vmem, size = 0x2000, scoped, tag = 'input window, operand 1, single buffered']
    #allocation6 [shape = 's32[1]{0}', space=sflag, size = 0x4, scoped, tag = 'scoped memory for tpu_custom_call.1']
    #allocation7 [shape = 'u8[4096]{0}', space=vmem, size = 0x1000, scoped, tag = 'output window, operand 0, single buffered']
    %7 = vsyncpa [#allocation3], 0
    %8 = vsyncpa [#allocation6], 0
    %9 = vsyncpa [#allocation4], 0
    // Predicated region
    $region2: #{tpu_custom_call.1} parent=1 // pred_check
      _
    $region3: #{tpu_custom_call.1} parent=1 // pred_check_branch
      %11 = sbr.rel (0) target = $region5
    $region4: #{tpu_custom_call.1} parent=1 // pred_region
      %s12 = sadd.s32 0, 0
      %s13 = smul.u32 2, %s12
      %s15 = ssub.s32 256, 256
      %16 = vsyncadd [#allocation3], %s15
      %s17 = smul.addr %s13, 128
      %s18 = scalar_lea.hbm %s0, %s17
      %s19 = sshll.u32 [#allocation2], 4
      %s20 = int_to_ptr.vmem [resolvable:$true] %s19
      %25 = dma.hbm_to_vmem [thread:$0]  %s18, 256, %s20, [#allocation3], 128, 128, 8
    $region5: #{tpu_custom_call.1} parent=1 // pred_fallthru
      _
    // Predicated region
    $region6: #{tpu_custom_call.1} parent=1 // pred_check
      _
    $region7: #{tpu_custom_call.1} parent=1 // pred_check_branch
      %27 = sbr.rel (0) target = $region9
    $region8: #{tpu_custom_call.1} parent=1 // pred_region
      %s28 = sadd.s32 0, 0
      %s29 = smul.u32 2, %s28
      %s31 = ssub.s32 256, 256
      %32 = vsyncadd [#allocation6], %s31
      %s33 = smul.addr %s29, 128
      %s34 = scalar_lea.hbm %s1, %s33
      %s35 = sshll.u32 [#allocation5], 4
      %s36 = int_to_ptr.vmem [resolvable:$true] %s35
      %41 = dma.hbm_to_vmem [thread:$0]  %s34, 256, %s36, [#allocation6], 128, 128, 8
    $region9: #{tpu_custom_call.1} parent=1 // pred_fallthru
      _
    // Predicated region
    $region10: #{tpu_custom_call.1} parent=1 // pred_check
      _
    $region11: #{tpu_custom_call.1} parent=1 // pred_check_branch
      %43 = sbr.rel (0) target = $region13
    $region12: #{tpu_custom_call.1} parent=1 // pred_region
      %44 = dma.done [#allocation3], 256
    $region13: #{tpu_custom_call.1} parent=1 // pred_fallthru
      _
    // Predicated region
    $region14: #{tpu_custom_call.1} parent=1 // pred_check
      _
    $region15: #{tpu_custom_call.1} parent=1 // pred_check_branch
      %46 = sbr.rel (0) target = $region17
    $region16: #{tpu_custom_call.1} parent=1 // pred_region
      %47 = dma.done [#allocation6], 256
    $region17: #{tpu_custom_call.1} parent=1 // pred_fallthru
      _
    %s48 = sadd.s32 0, 0
    %s49 = smul.u32 2, %s48
    %s50 = sadd.s32 0, 0
    %s51 = smul.u32 2, %s50
    %p52 = scmp.eq.s32.totalorder 0, 0
    // Predicated region
    $region18: #{tpu_custom_call.1} parent=1 // pred_check
      %p53 = pneg %p52
    $region19: #{tpu_custom_call.1} parent=1 // pred_check_branch
      %55 = sbr.rel (%p53) target = $region21
    $region20: #{tpu_custom_call.1} parent=1 // pred_region
      %56 = vst [vmem:[#allocation7] sm:$0xff] 0.0
    $region21: #{tpu_custom_call.1} parent=1 // pred_fallthru
      _
    %v57 = vld [vmem:[#allocation2] sm:$0xff]
    %v58 = vld [vmem:[#allocation2 + $0x8] sm:$0xff]
    %v59 = vld [vmem:[#allocation5] sm:$0xff]
    %v60 = vld [vmem:[#allocation5 + $0x8] sm:$0xff]
    %v61 = vlog2.pop %v57
    %v62 = vmul.f32 %v61, 0.6931472
    %v63 = vlog2.pop %v58
    %v64 = vmul.f32 %v63, 0.6931472
    %v65 = vmax.f32 %v62, -100.0
    %v66 = vmax.f32 %v64, -100.0
    %v67 = vsub.f32 1.0, %v57
    %v68 = vsub.f32 1.0, %v58
    %v69 = vlog2.pop %v67
    %v70 = vmul.f32 %v69, 0.6931472
    %v71 = vlog2.pop %v68
    %v72 = vmul.f32 %v71, 0.6931472
    %v73 = vmax.f32 %v70, -100.0
    %v74 = vmax.f32 %v72, -100.0
    %v75 = vmul.f32 %v59, %v65
    %v76 = vmul.f32 %v60, %v66
    %v77 = vsub.f32 1.0, %v59
    %v78 = vsub.f32 1.0, %v60
    %v79 = vmul.f32 %v77, %v73
    %v80 = vmul.f32 %v78, %v74
    %v81 = vadd.f32 %v75, %v79
    %v82 = vadd.f32 %v76, %v80
    %v83 = vsub.f32 0.0, %v81
    %v84 = vsub.f32 0.0, %v82
    %v85 = vld [vmem:[#allocation7] sm:$0x1]
    %v86 = vadd.f32 %v83, %v84
    %v87 = vrot.slane %v86, 4
    %v88 = vadd.f32 %v86, %v87
    %v89 = vrot.slane %v88, 2
    %v90 = vadd.f32 %v88, %v89
    %v91 = vrot.slane %v90, 1
    %v92 = vadd.f32 %v90, %v91
    %v93 = vadd.f32 %v85, %v92
    %94 = vst [vmem:[#allocation7] sm:$0x1] %v93
    // Predicated region
    $region22: #{tpu_custom_call.1} parent=1 // pred_check
      _
    $region23: #{tpu_custom_call.1} parent=1 // pred_check_branch
      %96 = sbr.rel (0) target = $region25
    $region24: #{tpu_custom_call.1} parent=1 // pred_region
      %s98 = ssub.s32 128, 128
      %99 = vsyncadd [#allocation4], %s98
      %s101 = sshll.u32 [#allocation7], 4
      %s102 = int_to_ptr.vmem [resolvable:$true] %s101
      %104 = dma.vmem_to_hbm [thread:$0]  %s102, 128, %s2, [#allocation4]
    $region25: #{tpu_custom_call.1} parent=1 // pred_fallthru
      _
    // Predicated region
    $region26: #{tpu_custom_call.1} parent=1 // pred_check
      _
    $region27: #{tpu_custom_call.1} parent=1 // pred_check_branch
      %106 = sbr.rel (0) target = $region29
    $region28: #{tpu_custom_call.1} parent=1 // pred_region
      %107 = dma.done [#allocation4], 128
    $region29: #{tpu_custom_call.1} parent=1 // pred_fallthru
      _
    %108 = vsyncpa [#allocation3], 1
    %109 = vsyncpa [#allocation6], 1
    %110 = vsyncpa [#allocation4], 1

</llo_original>
